<compile_context>
chip_gen: v7x
topology: tpu7x:2x2x1
jax: 0.10.0
libtpu: 0.0.40
codegen_flags: <defaults>
</compile_context>

<pallas_src>
import jax
import jax.numpy as jnp
from jax.experimental import pallas as pl
from jax.experimental.pallas import tpu as pltpu


# ----------------------------------------------------------------------------
# Fused kernel: both 1x1 convs (+folded BN), hardsigmoid, bilinear upsample
# (as a matmul with the Kronecker interp matrix) and the elementwise multiply.
# ----------------------------------------------------------------------------
def _fuse_block_dot_kernel(xl_ref, xh_ref, wlT_ref, bl_ref, whT_ref, bh_ref,
                           m_ref, o_ref):
    # xl_ref : (C, THW)      high-res input tile (spatial on lanes)
    # xh_ref : (C, HW2)      full low-res input for this batch
    # wlT_ref/whT_ref: (O, C) BN-scale-folded 1x1 conv weights (transposed)
    # bl_ref/bh_ref  : (O, 1) BN biases
    # m_ref  : (HW2, THW)    Kronecker bilinear-interp matrix tile
    # o_ref  : (O, THW)

    # Low-res branch: 1x1 conv + bias + hardsigmoid (clamp((x+3)/6, 0, 1)).
    fh = jnp.dot(whT_ref[...], xh_ref[...], preferred_element_type=jnp.float32)
    fh = fh + bh_ref[...]
    fh = jnp.clip(fh / 6.0 + 0.5, 0.0, 1.0)

    # Bilinear upsample of this spatial tile as one matmul.
    up = jnp.dot(fh, m_ref[...], preferred_element_type=jnp.float32)

    # High-res branch: 1x1 conv + bias (no activation).
    fl = jnp.dot(wlT_ref[...], xl_ref[...], preferred_element_type=jnp.float32)
    fl = fl + bl_ref[...]

    o_ref[...] = (fl * up).astype(o_ref.dtype)


def _pick_spatial_tile(hw, max_tile=2048):
    """Largest multiple of 128 that divides hw and is <= max_tile (else hw)."""
    if hw % 128 != 0:
        return hw  # small / ragged spatial: single full block
    t = min((max_tile // 128) * 128, hw)
    while hw % t != 0:
        t -= 128
    return t


# ----------------------------------------------------------------------------
# Glue: interpolation matrices (align_corners=False, PyTorch 'bilinear')
# ----------------------------------------------------------------------------
def make_interp_matrix(out_size, in_size):
    i = jnp.arange(out_size, dtype=jnp.float32)
    src = (i + 0.5) * (in_size / out_size) - 0.5
    src = jnp.maximum(src, 0.0)  # PyTorch clamps negative source index to 0
    i0 = jnp.clip(jnp.floor(src).astype(jnp.int32), 0, in_size - 1)
    frac = src - i0.astype(jnp.float32)
    i1 = jnp.minimum(i0 + 1, in_size - 1)
    A = (jax.nn.one_hot(i0, in_size, dtype=jnp.float32) * (1.0 - frac)[:, None]
         + jax.nn.one_hot(i1, in_size, dtype=jnp.float32) * frac[:, None])
    return A  # (out_size, in_size)


def fold_bn(gamma, beta, mean, var, eps=1e-5):
    s = gamma / jnp.sqrt(var + eps)
    b = beta - mean * s
    return s, b


# ----------------------------------------------------------------------------
# Wrapper: layout prep (contiguous reshapes only) + pallas_call
# ----------------------------------------------------------------------------
def fuse_block_dot(x_l, x_h, params):
    """x_l: (B, C, H, W) f32; x_h: (B, C, h2, w2) f32. Returns (B, O, H, W)."""
    B, C, H, W = x_l.shape
    _, _, h2, w2 = x_h.shape
    O = params["w_l"].shape[1]
    HW, HW2 = H * W, h2 * w2

    # Fold BN (eval mode) into the conv weights; transpose to (O, C) so the
    # kernel matmuls put the spatial dim on the lane axis.
    s_l, b_l = fold_bn(*params["bn_l"])
    s_h, b_h = fold_bn(*params["bn_h"])
    wlT = jnp.transpose(params["w_l"] * s_l[None, :])   # (O, C)
    whT = jnp.transpose(params["w_h"] * s_h[None, :])   # (O, C)
    bl = b_l.reshape(O, 1)
    bh = b_h.reshape(O, 1)

    # Kronecker bilinear interpolation matrix: M[p*w2+q, h*W+w] = Ah[h,p]*Aw[w,q]
    A_h = make_interp_matrix(H, h2)                     # (H, h2)
    A_w = make_interp_matrix(W, w2)                     # (W, w2)
    M = jnp.einsum("hp,wq->pqhw", A_h, A_w).reshape(HW2, HW)

    # NCHW kept; spatial flattened to the last (lane) dim — no transposes.
    xl_flat = x_l.reshape(B, C, HW)
    xh_flat = x_h.reshape(B, C, HW2)

    thw = _pick_spatial_tile(HW)
    grid = (B, HW // thw)

    out_flat = pl.pallas_call(
        _fuse_block_dot_kernel,
        out_shape=jax.ShapeDtypeStruct((B, O, HW), jnp.float32),
        grid_spec=pltpu.PrefetchScalarGridSpec(
            num_scalar_prefetch=0,
            grid=grid,
            in_specs=[
                # x_l tile: (C, thw) — spatial tiled on lanes.
                pl.BlockSpec((None, C, thw), lambda b, j: (b, 0, j)),
                # x_h: full (small) low-res plane; block index constant over j,
                # so it is fetched once per batch and stays resident.
                pl.BlockSpec((None, C, HW2), lambda b, j: (b, 0, 0)),
                # Folded conv weights / biases: grid-constant.
                pl.BlockSpec((O, C), lambda b, j: (0, 0)),
                pl.BlockSpec((O, 1), lambda b, j: (0, 0)),
                pl.BlockSpec((O, C), lambda b, j: (0, 0)),
                pl.BlockSpec((O, 1), lambda b, j: (0, 0)),
                # Interp matrix: column tile matching the spatial tile.
                pl.BlockSpec((HW2, thw), lambda b, j: (0, j)),
            ],
            out_specs=pl.BlockSpec((None, O, thw), lambda b, j: (b, 0, j)),
        ),
        compiler_params=pltpu.CompilerParams(
            dimension_semantics=("parallel", "parallel")),
    )(xl_flat, xh_flat, wlT, bl, whT, bh, M)

    return out_flat.reshape(B, O, H, W)


# ----------------------------------------------------------------------------
# Pure-JAX reference (independent, separable-upsample formulation)
# ----------------------------------------------------------------------------
def reference(x_l, x_h, params):
    B, C, H, W = x_l.shape
    s_l, b_l = fold_bn(*params["bn_l"])
    s_h, b_h = fold_bn(*params["bn_h"])

    def conv_bn(x, w, s, b, act):
        y = jnp.einsum("bchw,co->bohw", x, w)
        y = y * s[None, :, None, None] + b[None, :, None, None]
        if act:
            y = jnp.clip(y / 6.0 + 0.5, 0.0, 1.0)
        return y

    fl = conv_bn(x_l, params["w_l"], s_l, b_l, False)
    fh = conv_bn(x_h, params["w_h"], s_h, b_h, True)
    A_h = make_interp_matrix(H, x_h.shape[2])
    A_w = make_interp_matrix(W, x_h.shape[3])
    fh_up = jnp.einsum("hp,bopq,wq->bohw", A_h, fh, A_w)
    return fl * fh_up


if __name__ == "__main__":
    # Small shapes consistent with the module.
    B, C, O = 2, 4, 8
    H, W = 16, 16        # high-resolution branch spatial (x_l)
    h2, w2 = 8, 8        # low-resolution branch spatial (x_h)

    key = jax.random.PRNGKey(0)
    k1, k2, k3, k4 = jax.random.split(key, 4)

    x_l = jax.random.normal(k1, (B, C, H, W), dtype=jnp.float32)
    x_h = jax.random.normal(k2, (B, C, h2, w2), dtype=jnp.float32)

    # Conv2d weight (O, C, 1, 1) stored as (C, O).
    w_l = jax.random.normal(k3, (C, O), dtype=jnp.float32) * 0.1
    w_h = jax.random.normal(k4, (C, O), dtype=jnp.float32) * 0.1
    arange_o = jnp.arange(O, dtype=jnp.float32)
    bn_l = (1.0 + 0.10 * arange_o,        # gamma
            0.05 * arange_o,              # beta
            0.01 * arange_o,              # running_mean
            1.0 + 0.02 * arange_o)        # running_var
    bn_h = (1.0 - 0.05 * arange_o,
            -0.03 * arange_o,
            0.02 * arange_o,
            1.0 + 0.01 * arange_o)

    params = {"w_l": w_l, "w_h": w_h, "bn_l": bn_l, "bn_h": bn_h}

    out = jax.block_until_ready(fuse_block_dot(x_l, x_h, params))
    ref = jax.block_until_ready(reference(x_l, x_h, params))

    assert out.shape == (B, O, H, W), out.shape
    assert jnp.all(jnp.isfinite(out))
    assert jnp.allclose(out, ref, atol=1e-4, rtol=1e-4), (
        float(jnp.max(jnp.abs(out - ref))))
    print("KERNEL_OK")
</pallas_src>

<mosaic_0001>
module attributes {stable_mosaic.version = 11 : i64} {
  func.func @_fuse_block_dot_kernel(%arg0: i32, %arg1: i32, %arg2: memref<1x4x256xf32, #tpu.memory_space<vmem>>, %arg3: memref<1x4x64xf32, #tpu.memory_space<vmem>>, %arg4: memref<8x4xf32, #tpu.memory_space<vmem>>, %arg5: memref<8x1xf32, #tpu.memory_space<vmem>>, %arg6: memref<8x4xf32, #tpu.memory_space<vmem>>, %arg7: memref<8x1xf32, #tpu.memory_space<vmem>>, %arg8: memref<64x256xf32, #tpu.memory_space<vmem>>, %arg9: memref<1x8x256xf32, #tpu.memory_space<vmem>>) attributes {dimension_semantics = [#tpu.dimension_semantics<parallel>, #tpu.dimension_semantics<parallel>], iteration_bounds = array<i64: 2, 1>, scalar_prefetch = 0 : i64, scratch_operands = 0 : i64, tpu.core_type = #tpu.core_type<tc>, window_params = [{transform_indices = @transform_0, window_bounds = array<i64: 1, 4, 256>}, {transform_indices = @transform_1, window_bounds = array<i64: 1, 4, 64>}, {pipeline_mode = #tpu.pipeline_mode<synchronous>, transform_indices = @transform_2, window_bounds = array<i64: 8, 4>}, {pipeline_mode = #tpu.pipeline_mode<synchronous>, transform_indices = @transform_3, window_bounds = array<i64: 8, 1>}, {pipeline_mode = #tpu.pipeline_mode<synchronous>, transform_indices = @transform_4, window_bounds = array<i64: 8, 4>}, {pipeline_mode = #tpu.pipeline_mode<synchronous>, transform_indices = @transform_5, window_bounds = array<i64: 8, 1>}, {transform_indices = @transform_6, window_bounds = array<i64: 64, 256>}, {transform_indices = @transform_7, window_bounds = array<i64: 1, 8, 256>}]} {
    %c0 = arith.constant 0 : index
    %c0_0 = arith.constant 0 : index
    %0 = vector.load %arg6[%c0, %c0_0] : memref<8x4xf32, #tpu.memory_space<vmem>>, vector<8x4xf32>
    %c0_1 = arith.constant 0 : index
    %c0_2 = arith.constant 0 : index
    %c0_3 = arith.constant 0 : index
    %1 = vector.load %arg3[%c0_1, %c0_2, %c0_3] : memref<1x4x64xf32, #tpu.memory_space<vmem>>, vector<1x4x64xf32>
    %2 = vector.shape_cast %1 : vector<1x4x64xf32> to vector<4x64xf32>
    %cst = arith.constant dense<0.000000e+00> : vector<8x64xf32>
    %3 = tpu.matmul %0, %2, %cst {dimension_numbers = #tpu.dot_dimension_numbers<[1], [0], [0], [1], [0, 0, 1, 1], [], []>} : vector<8x4xf32>, vector<4x64xf32>, vector<8x64xf32> -> vector<8x64xf32>
    %c0_4 = arith.constant 0 : index
    %c0_5 = arith.constant 0 : index
    %4 = vector.load %arg7[%c0_4, %c0_5] : memref<8x1xf32, #tpu.memory_space<vmem>>, vector<8x1xf32>
    %5 = vector.broadcast %4 : vector<8x1xf32> to vector<8x64xf32>
    %6 = arith.addf %3, %5 : vector<8x64xf32>
    %cst_6 = arith.constant 6.000000e+00 : f32
    %7 = vector.broadcast %cst_6 : f32 to vector<8x64xf32>
    %8 = arith.divf %6, %7 : vector<8x64xf32>
    %cst_7 = arith.constant 5.000000e-01 : f32
    %9 = vector.broadcast %cst_7 : f32 to vector<8x64xf32>
    %10 = arith.addf %8, %9 : vector<8x64xf32>
    %cst_8 = arith.constant 0.000000e+00 : f32
    %cst_9 = arith.constant 1.000000e+00 : f32
    %11 = vector.broadcast %cst_8 : f32 to vector<8x64xf32>
    %12 = arith.maximumf %11, %10 : vector<8x64xf32>
    %13 = vector.broadcast %cst_9 : f32 to vector<8x64xf32>
    %14 = arith.minimumf %13, %12 : vector<8x64xf32>
    %c0_10 = arith.constant 0 : index
    %c0_11 = arith.constant 0 : index
    %15 = vector.load %arg8[%c0_10, %c0_11] : memref<64x256xf32, #tpu.memory_space<vmem>>, vector<64x256xf32>
    %cst_12 = arith.constant dense<0.000000e+00> : vector<8x256xf32>
    %16 = tpu.matmul %14, %15, %cst_12 {dimension_numbers = #tpu.dot_dimension_numbers<[1], [0], [0], [1], [0, 0, 1, 1], [], []>} : vector<8x64xf32>, vector<64x256xf32>, vector<8x256xf32> -> vector<8x256xf32>
    %c0_13 = arith.constant 0 : index
    %c0_14 = arith.constant 0 : index
    %17 = vector.load %arg4[%c0_13, %c0_14] : memref<8x4xf32, #tpu.memory_space<vmem>>, vector<8x4xf32>
    %c0_15 = arith.constant 0 : index
    %c0_16 = arith.constant 0 : index
    %c0_17 = arith.constant 0 : index
    %18 = vector.load %arg2[%c0_15, %c0_16, %c0_17] : memref<1x4x256xf32, #tpu.memory_space<vmem>>, vector<1x4x256xf32>
    %19 = vector.shape_cast %18 : vector<1x4x256xf32> to vector<4x256xf32>
    %cst_18 = arith.constant dense<0.000000e+00> : vector<8x256xf32>
    %20 = tpu.matmul %17, %19, %cst_18 {dimension_numbers = #tpu.dot_dimension_numbers<[1], [0], [0], [1], [0, 0, 1, 1], [], []>} : vector<8x4xf32>, vector<4x256xf32>, vector<8x256xf32> -> vector<8x256xf32>
    %c0_19 = arith.constant 0 : index
    %c0_20 = arith.constant 0 : index
    %21 = vector.load %arg5[%c0_19, %c0_20] : memref<8x1xf32, #tpu.memory_space<vmem>>, vector<8x1xf32>
    %22 = vector.broadcast %21 : vector<8x1xf32> to vector<8x256xf32>
    %23 = arith.addf %20, %22 : vector<8x256xf32>
    %24 = arith.mulf %23, %16 : vector<8x256xf32>
    %c0_21 = arith.constant 0 : index
    %c0_22 = arith.constant 0 : index
    %c0_23 = arith.constant 0 : index
    %25 = vector.load %arg9[%c0_21, %c0_22, %c0_23] : memref<1x8x256xf32, #tpu.memory_space<vmem>>, vector<1x8x256xf32>
    %26 = vector.shape_cast %25 : vector<1x8x256xf32> to vector<8x256xf32>
    %27 = vector.shape_cast %24 : vector<8x256xf32> to vector<1x8x256xf32>
    tpu.vector_store %arg9[%c0_21, %c0_22, %c0_23], %27 {strides = array<i32>} : memref<1x8x256xf32, #tpu.memory_space<vmem>>, vector<1x8x256xf32>,
    return
  }
  func.func @transform_0(%arg0: i32, %arg1: i32) -> (i32, i32, i32) {
    %c0_i32 = arith.constant 0 : i32
    %c0_i32_0 = arith.constant 0 : i32
    return %arg0, %c0_i32, %arg1 : i32, i32, i32
  }
  func.func @transform_1(%arg0: i32, %arg1: i32) -> (i32, i32, i32) {
    %c0_i32 = arith.constant 0 : i32
    %c0_i32_0 = arith.constant 0 : i32
    %c0_i32_1 = arith.constant 0 : i32
    return %arg0, %c0_i32, %c0_i32_0 : i32, i32, i32
  }
  func.func @transform_2(%arg0: i32, %arg1: i32) -> (i32, i32) {
    %c0_i32 = arith.constant 0 : i32
    %c0_i32_0 = arith.constant 0 : i32
    %c0_i32_1 = arith.constant 0 : i32
    return %c0_i32, %c0_i32_0 : i32, i32
  }
  func.func @transform_3(%arg0: i32, %arg1: i32) -> (i32, i32) {
    %c0_i32 = arith.constant 0 : i32
    %c0_i32_0 = arith.constant 0 : i32
    %c0_i32_1 = arith.constant 0 : i32
    return %c0_i32, %c0_i32_0 : i32, i32
  }
  func.func @transform_4(%arg0: i32, %arg1: i32) -> (i32, i32) {
    %c0_i32 = arith.constant 0 : i32
    %c0_i32_0 = arith.constant 0 : i32
    %c0_i32_1 = arith.constant 0 : i32
    return %c0_i32, %c0_i32_0 : i32, i32
  }
  func.func @transform_5(%arg0: i32, %arg1: i32) -> (i32, i32) {
    %c0_i32 = arith.constant 0 : i32
    %c0_i32_0 = arith.constant 0 : i32
    %c0_i32_1 = arith.constant 0 : i32
    return %c0_i32, %c0_i32_0 : i32, i32
  }
  func.func @transform_6(%arg0: i32, %arg1: i32) -> (i32, i32) {
    %c0_i32 = arith.constant 0 : i32
    %c0_i32_0 = arith.constant 0 : i32
    return %c0_i32, %arg1 : i32, i32
  }
  func.func @transform_7(%arg0: i32, %arg1: i32) -> (i32, i32, i32) {
    %c0_i32 = arith.constant 0 : i32
    %c0_i32_0 = arith.constant 0 : i32
    return %arg0, %c0_i32, %arg1 : i32, i32, i32
  }
}

</mosaic_0001>

<llo_original>
// kernel: tpu_custom_call.1
$region0: #{tpu_custom_call.1}
  #allocation0 [shape = 'u32[]', space=smem, size = 0x4, offset = 0x4, fixed_abs, tag = 'smem constant byte address 0x4 - core index']
  #allocation1 [shape = 'u32[144,128]{1,0:T(1,128)}', space=vmem, size = 0x12000, scoped, tag = 'internal scratch']
  %s0 = inlined_call_operand.vmem [shape: f32[2,4,256], index: 0, kind: input, shape index: {}]
  %s1 = inlined_call_operand.vmem [shape: f32[2,4,64], index: 1, kind: input, shape index: {}]
  %s2 = inlined_call_operand.vmem [shape: f32[8,4], index: 2, kind: input, shape index: {}]
  %s3 = inlined_call_operand.vmem [shape: f32[8,1], index: 3, kind: input, shape index: {}]
  %s4 = inlined_call_operand.vmem [shape: f32[8,4], index: 4, kind: input, shape index: {}]
  %s5 = inlined_call_operand.vmem [shape: f32[8,1], index: 5, kind: input, shape index: {}]
  %s6 = inlined_call_operand.hbm [shape: f32[64,256], index: 6, kind: input, shape index: {}]
  %s7 = inlined_call_operand.hbm [shape: f32[2,8,256], index: 7, kind: output, shape index: {}]
  %s8 = sld [smem:[#allocation0]]
  $region65: #{tpu_custom_call.1} parent=0
    _
  %s10 = ssub.s32 1, %s8
  %s11 = scalar_select 0, %s10, %s8
  $region1: #{tpu_custom_call.1} parent=0
    #allocation2 [shape = 'u8[65536]{0}', space=vmem, size = 0x10000, scoped, tag = 'input window, operand 6, single buffered']
    #allocation3 [shape = 's32[2]{0}', space=sflag, size = 0x8, scoped, tag = 'scoped memory for tpu_custom_call.1']
    #allocation4 [shape = 's32[2]{0}', space=sflag, size = 0x8, scoped, tag = 'scoped memory for tpu_custom_call.1']
    #allocation5 [shape = 'u8[16384]{0}', space=vmem, size = 0x4000, scoped, tag = 'output window, operand 0']
    %12 = vsyncpa [#allocation3], 0
    %13 = vsyncpa [#allocation4], 0
    %s14 = scalar_lea.sflag [#allocation4], 1
    %15 = vsyncpa %s14, 0
    loop: start=0, step=1, limit=4
    $region2: #{tpu_custom_call.1} parent=1 // loop_pre_header
      _
    $region3: #{tpu_custom_call.1} parent=1 // loop_header
      %s17 = sphi 0, %s21
      %p18 = scmp.ge.s32.totalorder %s17, 4
      %s24 = sphi 0, %s36
      %s25 = sphi 0, %s32
      %s26 = sphi 0, %s24
      %s27 = sphi 0, %s25
      %s28 = sphi 0, %s26
      %s29 = sphi 0, %s27
      %s41 = sphi 0, %s43
      %s44 = sphi 0, %s41
      %s45 = sphi 0, %s44
      %s61 = sphi 0, %s45
      %s67 = sphi 0, %s69
      %s70 = sphi 0, %s67
      %s71 = sphi 0, %s70
      %s87 = sphi 0, %s71
      %s91 = sphi 0, %s91
      %s93 = sphi 0, %s91
      %s94 = sphi 0, %s93
      %s108 = sphi 0, %s94
      %s112 = sphi 0, %s112
      %s114 = sphi 0, %s112
      %s115 = sphi 0, %s114
      %s129 = sphi 0, %s115
      %s133 = sphi 0, %s133
      %s135 = sphi 0, %s133
      %s136 = sphi 0, %s135
      %s150 = sphi 0, %s136
      %s154 = sphi 0, %s154
      %s156 = sphi 0, %s154
      %s157 = sphi 0, %s156
      %s171 = sphi 0, %s157
      %s177 = sphi 0, %s179
      %s180 = sphi 0, %s177
      %s181 = sphi 0, %s180
      %s197 = sphi 0, %s181
      %s205 = sphi 0, %s207
      %s208 = sphi 0, %s205
      %s209 = sphi 0, %s208
      %s225 = sphi 0, %s209
    $region4: #{tpu_custom_call.1} parent=1 // loop_header_branch
      %20 = sbr.rel (%p18) target = $region8
    $region5: #{tpu_custom_call.1} parent=1 // loop_body
      %s22 = ssub.s32 %s17, 1
      %s23 = ssub.s32 %s17, 2
      %s30 = sadd.s32 1, %s25
      %p31 = scmp.ge.s32.totalorder %s30, 1
      %s32 = scalar_select %p31, 0, %s30
      %s33 = sadd.s32 1, %s24
      %s34 = scalar_select %p31, %s33, %s24
      %p35 = scmp.ge.s32.totalorder %s34, 2
      %s36 = scalar_select %p35, 0, %s34
      %s37 = ssub.s32 %s24, %s36
      %s38 = ssub.s32 %s25, %s32
      %s39 = sor.u32 %s37, %s38
      %p40 = scmp.eq.s32.totalorder %s39, 0
      %s42 = sadd.s32 %s41, 1
      %s43 = scalar_select %p40, %s41, %s42
      %p46 = pneg %p40
      %p47 = scmp.eq.s32.totalorder %s17, 1
      %p48 = por %p46, %p47
      %p49 = scmp.ne.s32.totalorder %s41, %s44
      %p50 = scmp.eq.s32.totalorder %s17, 0
      %p51 = por %p49, %p50
      %p52 = scmp.ne.s32.totalorder %s41, %s44
      %p53 = scmp.eq.s32.totalorder %s22, 1
      %p54 = por %p52, %p53
      %p55 = scmp.ne.s32.totalorder %s44, %s45
      %p56 = scmp.eq.s32.totalorder %s22, 0
      %p57 = por %p55, %p56
      %p58 = scmp.ne.s32.totalorder %s44, %s45
      %p59 = scmp.eq.s32.totalorder %s23, 1
      %p60 = por %p58, %p59
      %p62 = scmp.ne.s32.totalorder %s45, %s61
      %p63 = scmp.eq.s32.totalorder %s23, 0
      %p64 = por %p62, %p63
      %s65 = ssub.s32 %s24, %s36
      %p66 = scmp.eq.s32.totalorder %s65, 0
      %s68 = sadd.s32 %s67, 1
      %s69 = scalar_select %p66, %s67, %s68
      %p72 = pneg %p66
      %p73 = scmp.eq.s32.totalorder %s17, 1
      %p74 = por %p72, %p73
      %p75 = scmp.ne.s32.totalorder %s67, %s70
      %p76 = scmp.eq.s32.totalorder %s17, 0
      %p77 = por %p75, %p76
      %p78 = scmp.ne.s32.totalorder %s67, %s70
      %p79 = scmp.eq.s32.totalorder %s22, 1
      %p80 = por %p78, %p79
      %p81 = scmp.ne.s32.totalorder %s70, %s71
      %p82 = scmp.eq.s32.totalorder %s22, 0
      %p83 = por %p81, %p82
      %p84 = scmp.ne.s32.totalorder %s70, %s71
      %p85 = scmp.eq.s32.totalorder %s23, 1
      %p86 = por %p84, %p85
      %p88 = scmp.ne.s32.totalorder %s71, %s87
      %p89 = scmp.eq.s32.totalorder %s23, 0
      %p90 = por %p88, %p89
      %s92 = sadd.s32 %s91, 1
      %p95 = scmp.eq.s32.totalorder %s17, 1
      %p96 = scmp.ne.s32.totalorder %s91, %s93
      %p97 = scmp.eq.s32.totalorder %s17, 0
      %p98 = por %p96, %p97
      %p99 = scmp.ne.s32.totalorder %s91, %s93
      %p100 = scmp.eq.s32.totalorder %s22, 1
      %p101 = por %p99, %p100
      %p102 = scmp.ne.s32.totalorder %s93, %s94
      %p103 = scmp.eq.s32.totalorder %s22, 0
      %p104 = por %p102, %p103
      %p105 = scmp.ne.s32.totalorder %s93, %s94
      %p106 = scmp.eq.s32.totalorder %s23, 1
      %p107 = por %p105, %p106
      %p109 = scmp.ne.s32.totalorder %s94, %s108
      %p110 = scmp.eq.s32.totalorder %s23, 0
      %p111 = por %p109, %p110
      %s113 = sadd.s32 %s112, 1
      %p116 = scmp.eq.s32.totalorder %s17, 1
      %p117 = scmp.ne.s32.totalorder %s112, %s114
      %p118 = scmp.eq.s32.totalorder %s17, 0
      %p119 = por %p117, %p118
      %p120 = scmp.ne.s32.totalorder %s112, %s114
      %p121 = scmp.eq.s32.totalorder %s22, 1
      %p122 = por %p120, %p121
      %p123 = scmp.ne.s32.totalorder %s114, %s115
      %p124 = scmp.eq.s32.totalorder %s22, 0
      %p125 = por %p123, %p124
      %p126 = scmp.ne.s32.totalorder %s114, %s115
      %p127 = scmp.eq.s32.totalorder %s23, 1
      %p128 = por %p126, %p127
      %p130 = scmp.ne.s32.totalorder %s115, %s129
      %p131 = scmp.eq.s32.totalorder %s23, 0
      %p132 = por %p130, %p131
      %s134 = sadd.s32 %s133, 1
      %p137 = scmp.eq.s32.totalorder %s17, 1
      %p138 = scmp.ne.s32.totalorder %s133, %s135
      %p139 = scmp.eq.s32.totalorder %s17, 0
      %p140 = por %p138, %p139
      %p141 = scmp.ne.s32.totalorder %s133, %s135
      %p142 = scmp.eq.s32.totalorder %s22, 1
      %p143 = por %p141, %p142
      %p144 = scmp.ne.s32.totalorder %s135, %s136
      %p145 = scmp.eq.s32.totalorder %s22, 0
      %p146 = por %p144, %p145
      %p147 = scmp.ne.s32.totalorder %s135, %s136
      %p148 = scmp.eq.s32.totalorder %s23, 1
      %p149 = por %p147, %p148
      %p151 = scmp.ne.s32.totalorder %s136, %s150
      %p152 = scmp.eq.s32.totalorder %s23, 0
      %p153 = por %p151, %p152
      %s155 = sadd.s32 %s154, 1
      %p158 = scmp.eq.s32.totalorder %s17, 1
      %p159 = scmp.ne.s32.totalorder %s154, %s156
      %p160 = scmp.eq.s32.totalorder %s17, 0
      %p161 = por %p159, %p160
      %p162 = scmp.ne.s32.totalorder %s154, %s156
      %p163 = scmp.eq.s32.totalorder %s22, 1
      %p164 = por %p162, %p163
      %p165 = scmp.ne.s32.totalorder %s156, %s157
      %p166 = scmp.eq.s32.totalorder %s22, 0
      %p167 = por %p165, %p166
      %p168 = scmp.ne.s32.totalorder %s156, %s157
      %p169 = scmp.eq.s32.totalorder %s23, 1
      %p170 = por %p168, %p169
      %p172 = scmp.ne.s32.totalorder %s157, %s171
      %p173 = scmp.eq.s32.totalorder %s23, 0
      %p174 = por %p172, %p173
      %s175 = ssub.s32 %s25, %s32
      %p176 = scmp.eq.s32.totalorder %s175, 0
      %s178 = sadd.s32 %s177, 1
      %s179 = scalar_select %p176, %s177, %s178
      %p182 = pneg %p176
      %p183 = scmp.eq.s32.totalorder %s17, 1
      %p184 = por %p182, %p183
      %p185 = scmp.ne.s32.totalorder %s177, %s180
      %p186 = scmp.eq.s32.totalorder %s17, 0
      %p187 = por %p185, %p186
      %p188 = scmp.ne.s32.totalorder %s177, %s180
      %p189 = scmp.eq.s32.totalorder %s22, 1
      %p190 = por %p188, %p189
      %p191 = scmp.ne.s32.totalorder %s180, %s181
      %p192 = scmp.eq.s32.totalorder %s22, 0
      %p193 = por %p191, %p192
      %p194 = scmp.ne.s32.totalorder %s180, %s181
      %p195 = scmp.eq.s32.totalorder %s23, 1
      %p196 = por %p194, %p195
      %p198 = scmp.ne.s32.totalorder %s181, %s197
      %p199 = scmp.eq.s32.totalorder %s23, 0
      %p200 = por %p198, %p199
      %s201 = ssub.s32 %s24, %s36
      %s202 = ssub.s32 %s25, %s32
      %s203 = sor.u32 %s201, %s202
      %p204 = scmp.eq.s32.totalorder %s203, 0
      %s206 = sadd.s32 %s205, 1
      %s207 = scalar_select %p204, %s205, %s206
      %p210 = pneg %p204
      %p211 = scmp.eq.s32.totalorder %s17, 1
      %p212 = por %p210, %p211
      %p213 = scmp.ne.s32.totalorder %s205, %s208
      %p214 = scmp.eq.s32.totalorder %s17, 0
      %p215 = por %p213, %p214
      %p216 = scmp.ne.s32.totalorder %s205, %s208
      %p217 = scmp.eq.s32.totalorder %s22, 1
      %p218 = por %p216, %p217
      %p219 = scmp.ne.s32.totalorder %s208, %s209
      %p220 = scmp.eq.s32.totalorder %s22, 0
      %p221 = por %p219, %p220
      %p222 = scmp.ne.s32.totalorder %s208, %s209
      %p223 = scmp.eq.s32.totalorder %s23, 1
      %p224 = por %p222, %p223
      %p226 = scmp.ne.s32.totalorder %s209, %s225
      %p227 = scmp.eq.s32.totalorder %s23, 0
      %p228 = por %p226, %p227
      %p229 = scmp.le.s32.totalorder 1, %s17
      %p230 = scmp.lt.s32.totalorder %s17, 3
      %p231 = pnand %p229, %p230
      %p232 = pneg %p231
      // Predicated region
      $region9: #{tpu_custom_call.1} parent=5 // pred_check
        _
      $region10: #{tpu_custom_call.1} parent=5 // pred_check_branch
        %234 = sbr.rel (%p231) target = $region12
      $region11: #{tpu_custom_call.1} parent=5 // pred_region
        %s235 = ssub.s32 %s17, 1
        // Predicated region
        $region13: #{tpu_custom_call.1} parent=11 // pred_check
          %p236 = pneg %p104
        $region14: #{tpu_custom_call.1} parent=11 // pred_check_branch
          %238 = sbr.rel (%p236) target = $region16
        $region15: #{tpu_custom_call.1} parent=11 // pred_region
          _
        $region16: #{tpu_custom_call.1} parent=11 // pred_fallthru
          _
        // Predicated region
        $region17: #{tpu_custom_call.1} parent=11 // pred_check
          %p239 = pneg %p125
        $region18: #{tpu_custom_call.1} parent=11 // pred_check_branch
          %241 = sbr.rel (%p239) target = $region20
        $region19: #{tpu_custom_call.1} parent=11 // pred_region
          _
        $region20: #{tpu_custom_call.1} parent=11 // pred_fallthru
          _
        // Predicated region
        $region21: #{tpu_custom_call.1} parent=11 // pred_check
          %p242 = pneg %p146
        $region22: #{tpu_custom_call.1} parent=11 // pred_check_branch
          %244 = sbr.rel (%p242) target = $region24
        $region23: #{tpu_custom_call.1} parent=11 // pred_region
          _
        $region24: #{tpu_custom_call.1} parent=11 // pred_fallthru
          _
        // Predicated region
        $region25: #{tpu_custom_call.1} parent=11 // pred_check
          %p245 = pneg %p167
        $region26: #{tpu_custom_call.1} parent=11 // pred_check_branch
          %247 = sbr.rel (%p245) target = $region28
        $region27: #{tpu_custom_call.1} parent=11 // pred_region
          _
        $region28: #{tpu_custom_call.1} parent=11 // pred_fallthru
          _
        // Predicated region
        $region29: #{tpu_custom_call.1} parent=11 // pred_check
          %p248 = pneg %p193
        $region30: #{tpu_custom_call.1} parent=11 // pred_check_branch
          %250 = sbr.rel (%p248) target = $region32
        $region31: #{tpu_custom_call.1} parent=11 // pred_region
          %s251 = smul.u32 2, %s27
          %s253 = ssub.s32 2048, 2048
          %254 = vsyncadd [#allocation3], %s253
          %s255 = smul.addr %s251, 128
          %s256 = scalar_lea.hbm %s6, %s255
          %s257 = sshll.u32 [#allocation2], 4
          %s258 = int_to_ptr.vmem [resolvable:$true] %s257
          %263 = dma.hbm_to_vmem [thread:$0]  %s256, 2048, %s258, [#allocation3], 256, 256, 16
        $region32: #{tpu_custom_call.1} parent=11 // pred_fallthru
          _
      $region12: #{tpu_custom_call.1} parent=5 // pred_fallthru
        _
      %p264 = scmp.lt.s32.totalorder %s17, 2
      // Predicated region
      $region33: #{tpu_custom_call.1} parent=5 // pred_check
        %p265 = pneg %p264
      $region34: #{tpu_custom_call.1} parent=5 // pred_check_branch
        %267 = sbr.rel (%p265) target = $region36
      $region35: #{tpu_custom_call.1} parent=5 // pred_region
        // Predicated region
        $region37: #{tpu_custom_call.1} parent=35 // pred_check
          %p268 = pneg %p51
        $region38: #{tpu_custom_call.1} parent=35 // pred_check_branch
          %270 = sbr.rel (%p268) target = $region40
        $region39: #{tpu_custom_call.1} parent=35 // pred_region
          %s271 = smul.u32 2, %s25
          %p272 = scmp.lt.s32.totalorder %s24, 1
          %s273 = scalar_select %p272, %s24, 1
          %p274 = scmp.lt.s32.totalorder %s271, 1
          %s275 = scalar_select %p274, %s271, 1
          %s276 = smul.addr %s273, 2
          %s277 = sadd.s32 %s275, %s276
          %s278 = smul.addr %s277, 4
          %s279 = scalar_lea.vmem %s0, %s278
          %s280 = smul.u32 2, %s25
        $region40: #{tpu_custom_call.1} parent=35 // pred_fallthru
          _
        // Predicated region
        $region41: #{tpu_custom_call.1} parent=35 // pred_check
          %p281 = pneg %p77
        $region42: #{tpu_custom_call.1} parent=35 // pred_check_branch
          %283 = sbr.rel (%p281) target = $region44
        $region43: #{tpu_custom_call.1} parent=35 // pred_region
          %p284 = scmp.lt.s32.totalorder %s24, 1
          %s285 = scalar_select %p284, %s24, 1
          %s286 = smul.addr %s285, 4
          %s287 = scalar_lea.vmem %s1, %s286
        $region44: #{tpu_custom_call.1} parent=35 // pred_fallthru
          _
      $region36: #{tpu_custom_call.1} parent=5 // pred_fallthru
        _
      %p288 = scmp.le.s32.totalorder 1, %s17
      %p289 = scmp.lt.s32.totalorder %s17, 3
      %p290 = pnand %p288, %p289
      %p291 = pneg %p290
      // Predicated region
      $region45: #{tpu_custom_call.1} parent=5 // pred_check
        _
      $region46: #{tpu_custom_call.1} parent=5 // pred_check_branch
        %293 = sbr.rel (%p290) target = $region48
      $region47: #{tpu_custom_call.1} parent=5 // pred_region
        %s294 = ssub.s32 %s17, 1
        // Predicated region
        $region49: #{tpu_custom_call.1} parent=47 // pred_check
          %p295 = pneg %p193
        $region50: #{tpu_custom_call.1} parent=47 // pred_check_branch
          %297 = sbr.rel (%p295) target = $region52
        $region51: #{tpu_custom_call.1} parent=47 // pred_region
          %298 = dma.done [#allocation3], 2048
        $region52: #{tpu_custom_call.1} parent=47 // pred_fallthru
          _
        %s299 = smul.u32 2, %s27
        %p300 = scmp.lt.s32.totalorder %s26, 1
        %s301 = scalar_select %p300, %s26, 1
        %p302 = scmp.lt.s32.totalorder %s299, 1
        %s303 = scalar_select %p302, %s299, 1
        %s304 = smul.addr %s301, 2
        %s305 = sadd.s32 %s303, %s304
        %s306 = smul.addr %s305, 4
        %s307 = scalar_lea.vmem %s0, %s306
        %p308 = pneg %p57
        %p309 = pneg %p54
        %p310 = scmp.lt.s32.totalorder %s26, 1
        %s311 = scalar_select %p310, %s26, 1
        %s312 = smul.addr %s311, 4
        %s313 = scalar_lea.vmem %s1, %s312
        %p314 = pneg %p83
        %p315 = pneg %p80
        %p316 = pneg %p104
        %p317 = pneg %p101
        %p318 = pneg %p125
        %p319 = pneg %p122
        %p320 = pneg %p146
        %p321 = pneg %p143
        %p322 = pneg %p167
        %p323 = pneg %p164
        %p324 = pneg %p193
        %p325 = pneg %p190
        %p326 = pneg %p221
        %p327 = pneg %p218
        %s328 = sand.u32 %s208, 1
        %s329 = scalar_lea.sflag [#allocation4], %s328
        %s330 = sand.u32 %s208, 1
        %s331 = smul.addr %s330, 16
        %s332 = scalar_lea.vmem [#allocation5], %s331
        %s333 = smul.u32 2, %s27
        %p334 = scmp.lt.s32.totalorder %s26, 1
        %s335 = scalar_select %p334, %s26, 1
        %p336 = scmp.lt.s32.totalorder %s333, 1
        %s337 = scalar_select %p336, %s333, 1
        %s338 = smul.addr %s335, 2
        %s339 = sadd.s32 %s337, %s338
        %s340 = smul.addr %s339, 4
        %s341 = scalar_lea.vmem %s0, %s340
        %s342 = smul.u32 2, %s27
        %p343 = scmp.lt.s32.totalorder %s26, 1
        %s344 = scalar_select %p343, %s26, 1
        %s345 = smul.addr %s344, 4
        %s346 = scalar_lea.vmem %s1, %s345
        %s347 = smul.u32 2, %s27
        %s348 = smul.u32 2, %s27
        %v349 = vld [vmem:[%s4] sm:$0xff]
        %v350 = vld [vmem:[%s346] sm:$0xf]
        %v351 = vld [vmem:[%s5] sm:$0xff]
        %353 = vset.pattern.permute.xlu0 0
        %354 = vperm.xlu0 %353, %v351
        %v355 = vpop.permute.xlu0 %354
        %vm357 = vcmask 31744
        %v359 = vsel %vm357, %v349, 0
        %vm361 = vcmask 1043456
        %v363 = vsel %vm361, %v350, 0
        %365 = vmatprep.subr.mxu0 0.0
        %366 = vmatpush1.msra.mxu0 %v363
        %367 = vmatprep.subr.mxu0 0.0
        %368 = vmatpush1.msra.mxu0 0.0
        %369 = vmatprep.subr.mxu0 0.0
        %370 = vmatpush1.msra.mxu0 0.0
        %371 = vmatprep.subr.mxu0 0.0
        %372 = vmatpush1.msra.mxu0 0.0
        %373 = vmatprep.subr.mxu0 0.0
        %374 = vmatpush1.msra.mxu0 0.0
        %375 = vmatprep.subr.mxu0 0.0
        %376 = vmatpush1.msra.mxu0 0.0
        %377 = vmatprep.subr.mxu0 0.0
        %378 = vmatpush1.msra.mxu0 0.0
        %379 = vmatprep.subr.mxu0 0.0
        %380 = vmatpush1.msra.mxu0 0.0
        %381 = vmatprep.subr.mxu0 0.0
        %382 = vmatpush1.msra.mxu0 0.0
        %383 = vmatprep.subr.mxu0 0.0
        %384 = vmatpush1.msra.mxu0 0.0
        %385 = vmatprep.subr.mxu0 0.0
        %386 = vmatpush1.msra.mxu0 0.0
        %387 = vmatprep.subr.mxu0 0.0
        %388 = vmatpush1.msra.mxu0 0.0
        %389 = vmatprep.subr.mxu0 0.0
        %390 = vmatpush1.msra.mxu0 0.0
        %391 = vmatprep.subr.mxu0 0.0
        %392 = vmatpush1.msra.mxu0 0.0
        %393 = vmatprep.subr.mxu0 0.0
        %394 = vmatpush1.msra.mxu0 0.0
        %395 = vmatprep.subr.mxu0 0.0
        %396 = vmatpush1.msra.mxu0 0.0
        %397 = vmatprep.subr.mxu0 0.0
        %398 = vmatpush1.msra.mxu0 0.0
        %399 = vmatprep.subr.mxu0 0.0
        %400 = vmatpush1.msra.mxu0 0.0
        %401 = vmatprep.subr.mxu0 0.0
        %402 = vmatpush1.msra.mxu0 0.0
        %403 = vmatprep.subr.mxu0 0.0
        %404 = vmatpush1.msra.mxu0 0.0
        %405 = vmatprep.subr.mxu0 0.0
        %406 = vmatpush1.msra.mxu0 0.0
        %407 = vmatprep.subr.mxu0 0.0
        %408 = vmatpush1.msra.mxu0 0.0
        %409 = vmatprep.subr.mxu0 0.0
        %410 = vmatpush1.msra.mxu0 0.0
        %411 = vmatprep.subr.mxu0 0.0
        %412 = vmatpush1.msra.mxu0 0.0
        %413 = vmatprep.subr.mxu0 0.0
        %414 = vmatpush1.msra.mxu0 0.0
        %415 = vmatprep.subr.mxu0 0.0
        %416 = vmatpush1.msra.mxu0 0.0
        %417 = vmatprep.subr.mxu0 0.0
        %418 = vmatpush1.msra.mxu0 0.0
        %419 = vmatprep.subr.mxu0 0.0
        %420 = vmatpush1.msra.mxu0 0.0
        %421 = vmatprep.subr.mxu0 0.0
        %422 = vmatpush1.msra.mxu0 0.0
        %423 = vmatprep.subr.mxu0 0.0
        %424 = vmatpush1.msra.mxu0 0.0
        %425 = vmatprep.subr.mxu0 0.0
        %426 = vmatpush1.msra.mxu0 0.0
        %427 = vmatprep.subr.mxu0 0.0
        %428 = vmatpush1.msra.mxu0 0.0
        %429 = vmatprep.mubr.f32.mxu0 0.0
        %430 = vmatmul.mubr.f32.gmra.mrb[0].mxu0 %v359
        %v431 = vpop.f32.mrb[0].mxu0
        %v432 = vadd.f32 %v355, %v431
        %v433 = vpop.f32.mrb[0].mxu0
        %434 = vdwg.mxu0
        %v435 = vrcp.pop 6.0
        %v436 = vmul.f32 %v432, %v435
        %v437 = vadd.f32 %v436, 0.5
        %v438 = vmax.f32 %v437, 0.0
        %v439 = vmin.f32 %v438, 1.0
        %v440 = vld [vmem:[#allocation2] sm:$0xff]
        %v441 = vld [vmem:[#allocation2 + $0x8] sm:$0xff]
        %v442 = vld [vmem:[#allocation2 + $0x10] sm:$0xff]
        %v443 = vld [vmem:[#allocation2 + $0x18] sm:$0xff]
        %v444 = vld [vmem:[#allocation2 + $0x20] sm:$0xff]
        %v445 = vld [vmem:[#allocation2 + $0x28] sm:$0xff]
        %v446 = vld [vmem:[#allocation2 + $0x30] sm:$0xff]
        %v447 = vld [vmem:[#allocation2 + $0x38] sm:$0xff]
        %v448 = vld [vmem:[#allocation2 + $0x40] sm:$0xff]
        %v449 = vld [vmem:[#allocation2 + $0x48] sm:$0xff]
        %v450 = vld [vmem:[#allocation2 + $0x50] sm:$0xff]
        %v451 = vld [vmem:[#allocation2 + $0x58] sm:$0xff]
        %v452 = vld [vmem:[#allocation2 + $0x60] sm:$0xff]
        %v453 = vld [vmem:[#allocation2 + $0x68] sm:$0xff]
        %v454 = vld [vmem:[#allocation2 + $0x70] sm:$0xff]
        %v455 = vld [vmem:[#allocation2 + $0x78] sm:$0xff]
        %vm456 = vcmask 523264
        %v458 = vsel %vm456, %v439, 0
        %460 = vmatprep.subr.mxu0 %v441
        %461 = vmatpush1.msra.mxu0 %v440
        %462 = vmatprep.subr.mxu0 %v443
        %463 = vmatpush1.msra.mxu0 %v442
        %464 = vmatprep.subr.mxu0 %v445
        %465 = vmatpush1.msra.mxu0 %v444
        %466 = vmatprep.subr.mxu0 %v447
        %467 = vmatpush1.msra.mxu0 %v446
        %468 = vmatprep.subr.mxu0 %v449
        %469 = vmatpush1.msra.mxu0 %v448
        %470 = vmatprep.subr.mxu0 %v451
        %471 = vmatpush1.msra.mxu0 %v450
        %472 = vmatprep.subr.mxu0 %v453
        %473 = vmatpush1.msra.mxu0 %v452
        %474 = vmatprep.subr.mxu0 %v455
        %475 = vmatpush1.msra.mxu0 %v454
        %476 = vmatprep.subr.mxu0 0.0
        %477 = vmatpush1.msra.mxu0 0.0
        %478 = vmatprep.subr.mxu0 0.0
        %479 = vmatpush1.msra.mxu0 0.0
        %480 = vmatprep.subr.mxu0 0.0
        %481 = vmatpush1.msra.mxu0 0.0
        %482 = vmatprep.subr.mxu0 0.0
        %483 = vmatpush1.msra.mxu0 0.0
        %484 = vmatprep.subr.mxu0 0.0
        %485 = vmatpush1.msra.mxu0 0.0
        %486 = vmatprep.subr.mxu0 0.0
        %487 = vmatpush1.msra.mxu0 0.0
        %488 = vmatprep.subr.mxu0 0.0
        %489 = vmatpush1.msra.mxu0 0.0
        %490 = vmatprep.subr.mxu0 0.0
        %491 = vmatpush1.msra.mxu0 0.0
        %492 = vmatprep.subr.mxu0 0.0
        %493 = vmatpush1.msra.mxu0 0.0
        %494 = vmatprep.subr.mxu0 0.0
        %495 = vmatpush1.msra.mxu0 0.0
        %496 = vmatprep.subr.mxu0 0.0
        %497 = vmatpush1.msra.mxu0 0.0
        %498 = vmatprep.subr.mxu0 0.0
        %499 = vmatpush1.msra.mxu0 0.0
        %500 = vmatprep.subr.mxu0 0.0
        %501 = vmatpush1.msra.mxu0 0.0
        %502 = vmatprep.subr.mxu0 0.0
        %503 = vmatpush1.msra.mxu0 0.0
        %504 = vmatprep.subr.mxu0 0.0
        %505 = vmatpush1.msra.mxu0 0.0
        %506 = vmatprep.subr.mxu0 0.0
        %507 = vmatpush1.msra.mxu0 0.0
        %508 = vmatprep.subr.mxu0 0.0
        %509 = vmatpush1.msra.mxu0 0.0
        %510 = vmatprep.subr.mxu0 0.0
        %511 = vmatpush1.msra.mxu0 0.0
        %512 = vmatprep.subr.mxu0 0.0
        %513 = vmatpush1.msra.mxu0 0.0
        %514 = vmatprep.subr.mxu0 0.0
        %515 = vmatpush1.msra.mxu0 0.0
        %516 = vmatprep.subr.mxu0 0.0
        %517 = vmatpush1.msra.mxu0 0.0
        %518 = vmatprep.subr.mxu0 0.0
        %519 = vmatpush1.msra.mxu0 0.0
        %520 = vmatprep.subr.mxu0 0.0
        %521 = vmatpush1.msra.mxu0 0.0
        %522 = vmatprep.subr.mxu0 0.0
        %523 = vmatpush1.msra.mxu0 0.0
        %524 = vmatprep.mubr.f32.mxu0 0.0
        %525 = vmatmul.mubr.f32.gmra.mrb[0].mxu0 %v458
        %v526 = vpop.f32.mrb[0].mxu0
        %v527 = vadd.f32 0.0, %v526
        %v528 = vpop.f32.mrb[0].mxu0
        %v529 = vadd.f32 0.0, %v528
        %530 = vdwg.mxu0
        %v531 = vld [vmem:[%s2] sm:$0xff]
        %v532 = vld [vmem:[%s341] sm:$0xff]
        %v533 = vld [vmem:[%s3] sm:$0xff]
        %535 = vset.pattern.permute.xlu0 0
        %536 = vperm.xlu0 %535, %v533
        %v537 = vpop.permute.xlu0 %536
        %v540 = vcombine.high %v532, %v532
        %v542 = vsel %vm357, %v531, 0
        %v544 = vsel %vm361, %v532, 0
        %v546 = vsel %vm361, %v540, 0
        %548 = vmatprep.subr.mxu0 %v546
        %549 = vmatpush1.msra.mxu0 %v544
        %550 = vmatprep.subr.mxu0 0.0
        %551 = vmatpush1.msra.mxu0 0.0
        %552 = vmatprep.subr.mxu0 0.0
        %553 = vmatpush1.msra.mxu0 0.0
        %554 = vmatprep.subr.mxu0 0.0
        %555 = vmatpush1.msra.mxu0 0.0
        %556 = vmatprep.subr.mxu0 0.0
        %557 = vmatpush1.msra.mxu0 0.0
        %558 = vmatprep.subr.mxu0 0.0
        %559 = vmatpush1.msra.mxu0 0.0
        %560 = vmatprep.subr.mxu0 0.0
        %561 = vmatpush1.msra.mxu0 0.0
        %562 = vmatprep.subr.mxu0 0.0
        %563 = vmatpush1.msra.mxu0 0.0
        %564 = vmatprep.subr.mxu0 0.0
        %565 = vmatpush1.msra.mxu0 0.0
        %566 = vmatprep.subr.mxu0 0.0
        %567 = vmatpush1.msra.mxu0 0.0
        %568 = vmatprep.subr.mxu0 0.0
        %569 = vmatpush1.msra.mxu0 0.0
        %570 = vmatprep.subr.mxu0 0.0
        %571 = vmatpush1.msra.mxu0 0.0
        %572 = vmatprep.subr.mxu0 0.0
        %573 = vmatpush1.msra.mxu0 0.0
        %574 = vmatprep.subr.mxu0 0.0
        %575 = vmatpush1.msra.mxu0 0.0
        %576 = vmatprep.subr.mxu0 0.0
        %577 = vmatpush1.msra.mxu0 0.0
        %578 = vmatprep.subr.mxu0 0.0
        %579 = vmatpush1.msra.mxu0 0.0
        %580 = vmatprep.subr.mxu0 0.0
        %581 = vmatpush1.msra.mxu0 0.0
        %582 = vmatprep.subr.mxu0 0.0
        %583 = vmatpush1.msra.mxu0 0.0
        %584 = vmatprep.subr.mxu0 0.0
        %585 = vmatpush1.msra.mxu0 0.0
        %586 = vmatprep.subr.mxu0 0.0
        %587 = vmatpush1.msra.mxu0 0.0
        %588 = vmatprep.subr.mxu0 0.0
        %589 = vmatpush1.msra.mxu0 0.0
        %590 = vmatprep.subr.mxu0 0.0
        %591 = vmatpush1.msra.mxu0 0.0
        %592 = vmatprep.subr.mxu0 0.0
        %593 = vmatpush1.msra.mxu0 0.0
        %594 = vmatprep.subr.mxu0 0.0
        %595 = vmatpush1.msra.mxu0 0.0
        %596 = vmatprep.subr.mxu0 0.0
        %597 = vmatpush1.msra.mxu0 0.0
        %598 = vmatprep.subr.mxu0 0.0
        %599 = vmatpush1.msra.mxu0 0.0
        %600 = vmatprep.subr.mxu0 0.0
        %601 = vmatpush1.msra.mxu0 0.0
        %602 = vmatprep.subr.mxu0 0.0
        %603 = vmatpush1.msra.mxu0 0.0
        %604 = vmatprep.subr.mxu0 0.0
        %605 = vmatpush1.msra.mxu0 0.0
        %606 = vmatprep.subr.mxu0 0.0
        %607 = vmatpush1.msra.mxu0 0.0
        %608 = vmatprep.subr.mxu0 0.0
        %609 = vmatpush1.msra.mxu0 0.0
        %610 = vmatprep.subr.mxu0 0.0
        %611 = vmatpush1.msra.mxu0 0.0
        %612 = vmatprep.mubr.f32.mxu0 0.0
        %613 = vmatmul.mubr.f32.gmra.mrb[0].mxu0 %v542
        %v614 = vpop.f32.mrb[0].mxu0
        %v615 = vadd.f32 %v537, %v614
        %v616 = vpop.f32.mrb[0].mxu0
        %v617 = vadd.f32 %v537, %v616
        %618 = vdwg.mxu0
        %v619 = vmul.f32 %v615, %v527
        %v620 = vmul.f32 %v617, %v529
        %621 = vst [vmem:[%s332] sm:$0xff] %v619
        %622 = vst [vmem:[%s332 + $0x8] sm:$0xff] %v620
        %s623 = sand.u32 %s208, 1
        %s624 = scalar_lea.sflag [#allocation4], %s623
        %s625 = sand.u32 %s208, 1
        %s626 = smul.addr %s625, 16
        %s627 = scalar_lea.vmem [#allocation5], %s626
        // Predicated region
        $region53: #{tpu_custom_call.1} parent=47 // pred_check
          %p628 = pneg %p218
        $region54: #{tpu_custom_call.1} parent=47 // pred_check_branch
          %630 = sbr.rel (%p628) target = $region56
        $region55: #{tpu_custom_call.1} parent=47 // pred_region
          %s631 = smul.u32 2, %s27
          %s633 = ssub.s32 256, 256
          %634 = vsyncadd %s624, %s633
          %s635 = smul.addr %s26, 2
          %s636 = sadd.s32 %s631, %s635
          %s637 = smul.addr %s636, 128
          %s638 = scalar_lea.hbm %s7, %s637
          %s640 = sshll.u32 %s627, 4
          %s641 = int_to_ptr.vmem [resolvable:$true] %s640
          %643 = dma.vmem_to_hbm [thread:$0]  %s641, 256, %s638, %s624
        $region56: #{tpu_custom_call.1} parent=47 // pred_fallthru
          _
      $region48: #{tpu_custom_call.1} parent=5 // pred_fallthru
        _
      %p644 = scmp.le.s32.totalorder 2, %s17
      // Predicated region
      $region57: #{tpu_custom_call.1} parent=5 // pred_check
        %p645 = pneg %p644
      $region58: #{tpu_custom_call.1} parent=5 // pred_check_branch
        %647 = sbr.rel (%p645) target = $region60
      $region59: #{tpu_custom_call.1} parent=5 // pred_region
        %s648 = ssub.s32 %s17, 2
        // Predicated region
        $region61: #{tpu_custom_call.1} parent=59 // pred_check
          %p649 = pneg %p224
        $region62: #{tpu_custom_call.1} parent=59 // pred_check_branch
          %651 = sbr.rel (%p649) target = $region64
        $region63: #{tpu_custom_call.1} parent=59 // pred_region
          %s652 = sand.u32 %s209, 1
          %s653 = scalar_lea.sflag [#allocation4], %s652
          %s654 = sand.u32 %s209, 1
          %s655 = smul.addr %s654, 16
          %s656 = scalar_lea.vmem [#allocation5], %s655
          %657 = dma.done %s653, 256
        $region64: #{tpu_custom_call.1} parent=59 // pred_fallthru
          _
      $region60: #{tpu_custom_call.1} parent=5 // pred_fallthru
        _
    $region6: #{tpu_custom_call.1} parent=1 // loop_footer
      %s21 = sadd.s32 1, %s17
    $region7: #{tpu_custom_call.1} parent=1 // loop_footer_branch
      %16 = sbr.rel target = $region3
    $region8: #{tpu_custom_call.1} parent=1 // loop_exit
      _
    %658 = vsyncpa [#allocation3], 1
    %s659 = scalar_lea.sflag [#allocation3], 1
    %660 = vsyncpa %s659, 1
    %661 = vsyncpa [#allocation4], 1
    %s662 = scalar_lea.sflag [#allocation4], 1
    %663 = vsyncpa %s662, 1

</llo_original>
